<compile_context>
chip_gen: v5e
topology: v5e:2x2
jax: 0.10.0
libtpu: 0.0.40
codegen_flags: <defaults>
</compile_context>

<pallas_src>
import functools

import jax
import jax.numpy as jnp
from jax.experimental import pallas as pl
from jax.experimental.pallas import tpu as pltpu

BN_EPS = 1e-5
LANE = 128
_NEG_BIG = -1e30            # additive softmax mask for padded lanes
_MXU_STATS_MIN_BATCH = 256  # use MXU ones-matmul reductions at/above this batch


def _round_up(n, m):
    return ((n + m - 1) // m) * m


def _make_clonalp_kernel(n_layers, n_mid, padded_dims, batch,
                         use_mxu_stats, apply_mask):
    """Fused (Linear -> BN -> PReLU)*n_mid -> Linear -> BN -> Softmax kernel.

    refs layout:
      refs[0]               : x        (B, n_site)           f32
      refs[1 .. n_layers]   : W_i      (in_i, padded_out_i)  bf16
      refs[1 + n_layers]    : vec slab (rows, p_max)         f32
                              rows per mid layer: [gamma, beta, alpha]
                              rows final layer:   [gamma, beta]
                              last row:           [softmax pad mask]
      refs[-1]              : out      (B, padded_out_last)  f32
    """
    inv_b = 1.0 / float(batch)

    def kernel(*refs):
        x_ref = refs[0]
        w_refs = refs[1:1 + n_layers]
        vec_ref = refs[1 + n_layers]
        out_ref = refs[-1]

        vecs = vec_ref[...]                 # one load of all small per-channel params
        h = x_ref[...].astype(jnp.float32)
        if use_mxu_stats:
            # (1, B) ones row: batch reductions become MXU matmuls, keeping the
            # XLU free (the MXU is otherwise nearly idle in this kernel).
            ones_row = jnp.ones((1, batch), jnp.float32)

        row = 0
        for i in range(n_layers):
            p_out = padded_dims[i]
            # Linear.  Bias dropped: with batch-statistic BN it is exactly
            # cancelled by the (y - mean) step -> dead compute.
            y = jnp.dot(h.astype(jnp.bfloat16), w_refs[i][...],
                        preferred_element_type=jnp.float32)

            gamma = vecs[row:row + 1, :p_out]
            beta = vecs[row + 1:row + 2, :p_out]

            # BatchNorm1d, training-mode (batch) statistics, biased variance.
            if use_mxu_stats:
                mu = jnp.dot(ones_row, y, precision=jax.lax.Precision.HIGHEST,
                             preferred_element_type=jnp.float32) * inv_b
                d = y - mu                          # centered, reused below
                var = jnp.dot(ones_row, d * d, precision=jax.lax.Precision.HIGHEST,
                              preferred_element_type=jnp.float32) * inv_b
            else:
                mu = jnp.mean(y, axis=0, keepdims=True)
                d = y - mu                          # centered, reused below
                var = jnp.mean(d * d, axis=0, keepdims=True)
            scale = gamma * jax.lax.rsqrt(var + BN_EPS)   # gamma folded into scale
            y = d * scale + beta

            if i < n_mid:
                alpha = vecs[row + 2:row + 3, :p_out]
                y = jnp.where(y > 0, y, alpha * y)        # per-channel PReLU
                row += 3
            else:
                row += 2
            h = y

        # Softmax over the last dim.  Padded lanes are knocked out by the
        # pre-baked additive mask row (0 on real lanes, -1e30 on pads).
        if apply_mask:
            h = h + vecs[row:row + 1, :padded_dims[-1]]
        m = jnp.max(h, axis=-1, keepdims=True)
        e = jnp.exp(h - m)
        denom = jnp.sum(e, axis=-1, keepdims=True)
        # Exact reciprocal: outputs are probabilities, rows must sum to 1.
        out_ref[...] = (e / denom).astype(out_ref.dtype)

    return kernel


def init_clonalp_params(key, n_site, n_clone, fc_mid_channels):
    """PyTorch-style init: Linear U(+-1/sqrt(in)), BN gamma=1 beta=0,
    PReLU alpha=0.25.  Linear weights stored transposed as (in, out)."""
    params = []
    in_ch = n_site
    dims = list(fc_mid_channels) + [n_clone]
    n_mid = len(fc_mid_channels)
    for i, out_ch in enumerate(dims):
        key, kw, kb = jax.random.split(key, 3)
        bound = 1.0 / float(in_ch) ** 0.5
        layer = {
            "w": jax.random.uniform(kw, (in_ch, out_ch), jnp.float32, -bound, bound),
            # bias kept for the reference; the kernel drops it (cancelled by BN).
            "b": jax.random.uniform(kb, (out_ch,), jnp.float32, -bound, bound),
            "gamma": jnp.ones((out_ch,), jnp.float32),
            "beta": jnp.zeros((out_ch,), jnp.float32),
        }
        if i < n_mid:
            layer["alpha"] = jnp.full((out_ch,), 0.25, jnp.float32)  # nn.PReLU(mc)
        params.append(layer)
        in_ch = out_ch
    return params


def pack_clonalp_params(params, n_site):
    """One-time packing -- call OUTSIDE the jitted forward.

    Zero-pads every out-dim to a multiple of 128 lanes, casts weights to bf16,
    and packs all per-channel vectors plus the softmax pad-mask into one f32
    slab (one DMA instead of many tiny ones)."""
    n_layers = len(params)
    n_mid = n_layers - 1
    n_clone = params[-1]["w"].shape[1]
    padded_dims = [_round_up(l["w"].shape[1], LANE) for l in params]
    p_max = max(padded_dims)

    weights = []
    rows = []
    in_dim = n_site
    for i, layer in enumerate(params):
        c_in, c_out = layer["w"].shape
        p_out = padded_dims[i]
        w = jnp.zeros((in_dim, p_out), jnp.float32).at[:c_in, :c_out].set(layer["w"])
        weights.append(w.astype(jnp.bfloat16))
        names = ("gamma", "beta", "alpha") if i < n_mid else ("gamma", "beta")
        for name in names:
            rows.append(jnp.zeros((p_max,), jnp.float32).at[:c_out].set(layer[name]))
        in_dim = p_out
    # Additive softmax mask row: 0 on real clone lanes, -1e30 on padded lanes.
    rows.append(jnp.where(jnp.arange(p_max) < n_clone, 0.0, _NEG_BIG).astype(jnp.float32))
    vec_slab = jnp.stack(rows, axis=0)
    return tuple(weights), vec_slab


@functools.partial(jax.jit, static_argnames=("n_clone", "return_padded"))
def clonalp_forward(x, weights, vec_slab, *, n_clone, return_padded=False):
    """Fused clonalP forward.  `weights`/`vec_slab` come from pack_clonalp_params."""
    batch, n_site = x.shape
    n_layers = len(weights)
    n_mid = n_layers - 1
    padded_dims = tuple(int(w.shape[1]) for w in weights)
    p_final = padded_dims[-1]
    apply_mask = p_final != n_clone
    use_mxu_stats = batch >= _MXU_STATS_MIN_BATCH

    kernel = _make_clonalp_kernel(n_layers, n_mid, padded_dims, batch,
                                  use_mxu_stats, apply_mask)

    in_dims = (n_site,) + padded_dims[:-1]
    flops = 2 * batch * sum(a * b for a, b in zip(in_dims, padded_dims))
    if use_mxu_stats:
        flops += 4 * batch * sum(padded_dims)          # ones-row stat matmuls
    io_bytes = (x.size * 4 + sum(w.size * 2 for w in weights)
                + vec_slab.size * 4 + batch * p_final * 4)
    cost = pl.CostEstimate(
        flops=flops,
        transcendentals=batch * p_final + sum(padded_dims),  # exp + per-channel rsqrt
        bytes_accessed=io_bytes,
    )

    # Whole problem stays resident in VMEM (no grid): size the scoped-VMEM
    # limit to the real footprint so large batches don't hit the 16/32 MiB
    # defaults.  Capped at 64 MiB (v7x physical VMEM per TensorCore).
    act_bytes = 6 * batch * max(padded_dims) * 4
    vmem_limit = int(min(64 << 20, max(32 << 20, 2 * io_bytes + act_bytes + (8 << 20))))
    # TODO(synk): beyond ~30k rows on v7x (~60k on v5e/v6e) this exceeds VMEM;
    # switch to a batch grid with two-pass BN (global sum/sumsq scratch on an
    # "arbitrary" axis) and mark the batch axis "parallel" for v7x's 2 TCs.

    vmem = pl.BlockSpec(memory_space=pltpu.MemorySpace.VMEM)
    out_padded = pl.pallas_call(
        kernel,
        out_shape=jax.ShapeDtypeStruct((batch, p_final), jnp.float32),
        in_specs=[vmem] * (1 + n_layers + 1),
        out_specs=vmem,
        compiler_params=pltpu.CompilerParams(vmem_limit_bytes=vmem_limit),
        cost_estimate=cost,
    )(x, *weights, vec_slab)

    if return_padded or not apply_mask:
        # Lane-dense (B, p_final) result; consumers that tolerate padded lanes
        # should take this and skip the extra copy below.
        return out_padded
    return out_padded[:, :n_clone]


def clonalp_reference(x, params, *, match_kernel_numerics=False):
    """Pure-JAX reference with PyTorch training-mode semantics.

    match_kernel_numerics=False: faithful f32 forward incl. the Linear bias.
    match_kernel_numerics=True : replicates the kernel's numerics (bf16 matmul
      inputs, bias dropped -- exactly cancelled by batch-stat BN) for a tight check.
    """
    h = x.astype(jnp.float32)
    n_mid = len(params) - 1
    for i, layer in enumerate(params):
        if match_kernel_numerics:
            y = jnp.dot(h.astype(jnp.bfloat16), layer["w"].astype(jnp.bfloat16),
                        preferred_element_type=jnp.float32)
        else:
            y = h @ layer["w"] + layer["b"]
        mu = jnp.mean(y, axis=0, keepdims=True)
        d = y - mu
        var = jnp.mean(d * d, axis=0, keepdims=True)
        y = d * (layer["gamma"] * jax.lax.rsqrt(var + BN_EPS)) + layer["beta"]
        if i < n_mid:
            y = jnp.where(y > 0, y, layer["alpha"] * y)
        h = y
    m = jnp.max(h, axis=-1, keepdims=True)
    e = jnp.exp(h - m)
    return e / jnp.sum(e, axis=-1, keepdims=True)


if __name__ == "__main__":
    # Small deterministic example: x (batch, n_site) -> p (batch, n_clone).
    # NOTE(perf): for real workloads feed batch >= 128/256 to amortize fixed
    # overhead -- but do NOT zero-pad the batch (it changes the BN statistics).
    batch = 8
    n_site = 32
    n_clone = 16
    fc_mid_channels = [64, 32]

    key = jax.random.PRNGKey(0)
    key, kx = jax.random.split(key)
    x = jax.random.normal(kx, (batch, n_site), jnp.float32)
    params = init_clonalp_params(key, n_site, n_clone, fc_mid_channels)

    # Pack once, outside the jitted forward (perf review item 1).
    weights, vec_slab = pack_clonalp_params(params, n_site)

    p = clonalp_forward(x, weights, vec_slab, n_clone=n_clone)
    p = jax.block_until_ready(p)
    assert p.shape == (batch, n_clone)

    # Rows are exact softmax probabilities (exact reciprocal in the kernel).
    row_sums = jnp.sum(p, axis=-1)
    assert jnp.allclose(row_sums, 1.0, atol=1e-4), row_sums

    # Tight check vs. a reference that replicates the kernel's bf16 numerics.
    p_bf16 = clonalp_reference(x, params, match_kernel_numerics=True)
    assert jnp.allclose(p, p_bf16, atol=1e-3), float(jnp.max(jnp.abs(p - p_bf16)))

    # Loose check vs. the faithful f32 PyTorch-semantics reference
    # (difference stems only from bf16 weight/activation quantization).
    p_ref = clonalp_reference(x, params)
    assert jnp.allclose(p, p_ref, atol=3e-2), float(jnp.max(jnp.abs(p - p_ref)))

    print("KERNEL_OK")
</pallas_src>

<mosaic_0001>
module attributes {stable_mosaic.version = 11 : i64} {
  func.func @kernel(%arg0: memref<8x32xf32, #tpu.memory_space<vmem>>, %arg1: memref<32x128xbf16, #tpu.memory_space<vmem>>, %arg2: memref<128x128xbf16, #tpu.memory_space<vmem>>, %arg3: memref<128x128xbf16, #tpu.memory_space<vmem>>, %arg4: memref<9x128xf32, #tpu.memory_space<vmem>>, %arg5: memref<8x128xf32, #tpu.memory_space<vmem>>) attributes {dimension_semantics = [], scalar_prefetch = 0 : i64, scratch_operands = 0 : i64, tpu.core_type = #tpu.core_type<tc>} {
    %c0 = arith.constant 0 : index
    %c0_0 = arith.constant 0 : index
    %0 = vector.load %arg4[%c0, %c0_0] : memref<9x128xf32, #tpu.memory_space<vmem>>, vector<9x128xf32>
    %c0_1 = arith.constant 0 : index
    %c0_2 = arith.constant 0 : index
    %1 = vector.load %arg0[%c0_1, %c0_2] : memref<8x32xf32, #tpu.memory_space<vmem>>, vector<8x32xf32>
    %2 = arith.truncf %1 : vector<8x32xf32> to vector<8x32xbf16>
    %c0_3 = arith.constant 0 : index
    %c0_4 = arith.constant 0 : index
    %3 = vector.load %arg1[%c0_3, %c0_4] : memref<32x128xbf16, #tpu.memory_space<vmem>>, vector<32x128xbf16>
    %cst = arith.constant dense<0.000000e+00> : vector<8x128xf32>
    %4 = tpu.matmul %2, %3, %cst {dimension_numbers = #tpu.dot_dimension_numbers<[1], [0], [0], [1], [0, 0, 1, 1], [], []>} : vector<8x32xbf16>, vector<32x128xbf16>, vector<8x128xf32> -> vector<8x128xf32>
    %5 = vector.extract_strided_slice %0 {offsets = [0, 0], sizes = [1, 128], strides = [1, 1]} : vector<9x128xf32> to vector<1x128xf32>
    %6 = vector.extract_strided_slice %0 {offsets = [1, 0], sizes = [1, 128], strides = [1, 1]} : vector<9x128xf32> to vector<1x128xf32>
    %cst_5 = arith.constant dense<0.000000e+00> : vector<128xf32>
    %7 = vector.multi_reduction <add>, %4, %cst_5 [0] : vector<8x128xf32> to vector<128xf32>
    %8 = vector.shape_cast %7 : vector<128xf32> to vector<1x128xf32>
    %cst_6 = arith.constant 8.000000e+00 : f32
    %9 = vector.broadcast %cst_6 : f32 to vector<1x128xf32>
    %10 = arith.divf %8, %9 : vector<1x128xf32>
    %11 = vector.broadcast %10 : vector<1x128xf32> to vector<8x128xf32>
    %12 = arith.subf %4, %11 : vector<8x128xf32>
    %13 = arith.mulf %12, %12 : vector<8x128xf32>
    %cst_7 = arith.constant dense<0.000000e+00> : vector<128xf32>
    %14 = vector.multi_reduction <add>, %13, %cst_7 [0] : vector<8x128xf32> to vector<128xf32>
    %15 = vector.shape_cast %14 : vector<128xf32> to vector<1x128xf32>
    %cst_8 = arith.constant 8.000000e+00 : f32
    %16 = vector.broadcast %cst_8 : f32 to vector<1x128xf32>
    %17 = arith.divf %15, %16 : vector<1x128xf32>
    %cst_9 = arith.constant 9.99999974E-6 : f32
    %18 = vector.broadcast %cst_9 : f32 to vector<1x128xf32>
    %19 = arith.addf %17, %18 : vector<1x128xf32>
    %20 = math.rsqrt %19 : vector<1x128xf32>
    %21 = arith.mulf %5, %20 : vector<1x128xf32>
    %22 = vector.broadcast %21 : vector<1x128xf32> to vector<8x128xf32>
    %23 = arith.mulf %12, %22 : vector<8x128xf32>
    %24 = vector.broadcast %6 : vector<1x128xf32> to vector<8x128xf32>
    %25 = arith.addf %23, %24 : vector<8x128xf32>
    %26 = vector.extract_strided_slice %0 {offsets = [2, 0], sizes = [1, 128], strides = [1, 1]} : vector<9x128xf32> to vector<1x128xf32>
    %cst_10 = arith.constant 0.000000e+00 : f32
    %27 = vector.broadcast %cst_10 : f32 to vector<8x128xf32>
    %28 = arith.cmpf ogt, %25, %27 : vector<8x128xf32>
    %29 = vector.broadcast %26 : vector<1x128xf32> to vector<8x128xf32>
    %30 = arith.mulf %29, %25 : vector<8x128xf32>
    %31 = arith.select %28, %25, %30 : vector<8x128xi1>, vector<8x128xf32>
    %32 = arith.truncf %31 : vector<8x128xf32> to vector<8x128xbf16>
    %c0_11 = arith.constant 0 : index
    %c0_12 = arith.constant 0 : index
    %33 = vector.load %arg2[%c0_11, %c0_12] : memref<128x128xbf16, #tpu.memory_space<vmem>>, vector<128x128xbf16>
    %cst_13 = arith.constant dense<0.000000e+00> : vector<8x128xf32>
    %34 = tpu.matmul %32, %33, %cst_13 {dimension_numbers = #tpu.dot_dimension_numbers<[1], [0], [0], [1], [0, 0, 1, 1], [], []>} : vector<8x128xbf16>, vector<128x128xbf16>, vector<8x128xf32> -> vector<8x128xf32>
    %35 = vector.extract_strided_slice %0 {offsets = [3, 0], sizes = [1, 128], strides = [1, 1]} : vector<9x128xf32> to vector<1x128xf32>
    %36 = vector.extract_strided_slice %0 {offsets = [4, 0], sizes = [1, 128], strides = [1, 1]} : vector<9x128xf32> to vector<1x128xf32>
    %cst_14 = arith.constant dense<0.000000e+00> : vector<128xf32>
    %37 = vector.multi_reduction <add>, %34, %cst_14 [0] : vector<8x128xf32> to vector<128xf32>
    %38 = vector.shape_cast %37 : vector<128xf32> to vector<1x128xf32>
    %cst_15 = arith.constant 8.000000e+00 : f32
    %39 = vector.broadcast %cst_15 : f32 to vector<1x128xf32>
    %40 = arith.divf %38, %39 : vector<1x128xf32>
    %41 = vector.broadcast %40 : vector<1x128xf32> to vector<8x128xf32>
    %42 = arith.subf %34, %41 : vector<8x128xf32>
    %43 = arith.mulf %42, %42 : vector<8x128xf32>
    %cst_16 = arith.constant dense<0.000000e+00> : vector<128xf32>
    %44 = vector.multi_reduction <add>, %43, %cst_16 [0] : vector<8x128xf32> to vector<128xf32>
    %45 = vector.shape_cast %44 : vector<128xf32> to vector<1x128xf32>
    %cst_17 = arith.constant 8.000000e+00 : f32
    %46 = vector.broadcast %cst_17 : f32 to vector<1x128xf32>
    %47 = arith.divf %45, %46 : vector<1x128xf32>
    %cst_18 = arith.constant 9.99999974E-6 : f32
    %48 = vector.broadcast %cst_18 : f32 to vector<1x128xf32>
    %49 = arith.addf %47, %48 : vector<1x128xf32>
    %50 = math.rsqrt %49 : vector<1x128xf32>
    %51 = arith.mulf %35, %50 : vector<1x128xf32>
    %52 = vector.broadcast %51 : vector<1x128xf32> to vector<8x128xf32>
    %53 = arith.mulf %42, %52 : vector<8x128xf32>
    %54 = vector.broadcast %36 : vector<1x128xf32> to vector<8x128xf32>
    %55 = arith.addf %53, %54 : vector<8x128xf32>
    %56 = vector.extract_strided_slice %0 {offsets = [5, 0], sizes = [1, 128], strides = [1, 1]} : vector<9x128xf32> to vector<1x128xf32>
    %cst_19 = arith.constant 0.000000e+00 : f32
    %57 = vector.broadcast %cst_19 : f32 to vector<8x128xf32>
    %58 = arith.cmpf ogt, %55, %57 : vector<8x128xf32>
    %59 = vector.broadcast %56 : vector<1x128xf32> to vector<8x128xf32>
    %60 = arith.mulf %59, %55 : vector<8x128xf32>
    %61 = arith.select %58, %55, %60 : vector<8x128xi1>, vector<8x128xf32>
    %62 = arith.truncf %61 : vector<8x128xf32> to vector<8x128xbf16>
    %c0_20 = arith.constant 0 : index
    %c0_21 = arith.constant 0 : index
    %63 = vector.load %arg3[%c0_20, %c0_21] : memref<128x128xbf16, #tpu.memory_space<vmem>>, vector<128x128xbf16>
    %cst_22 = arith.constant dense<0.000000e+00> : vector<8x128xf32>
    %64 = tpu.matmul %62, %63, %cst_22 {dimension_numbers = #tpu.dot_dimension_numbers<[1], [0], [0], [1], [0, 0, 1, 1], [], []>} : vector<8x128xbf16>, vector<128x128xbf16>, vector<8x128xf32> -> vector<8x128xf32>
    %65 = vector.extract_strided_slice %0 {offsets = [6, 0], sizes = [1, 128], strides = [1, 1]} : vector<9x128xf32> to vector<1x128xf32>
    %66 = vector.extract_strided_slice %0 {offsets = [7, 0], sizes = [1, 128], strides = [1, 1]} : vector<9x128xf32> to vector<1x128xf32>
    %cst_23 = arith.constant dense<0.000000e+00> : vector<128xf32>
    %67 = vector.multi_reduction <add>, %64, %cst_23 [0] : vector<8x128xf32> to vector<128xf32>
    %68 = vector.shape_cast %67 : vector<128xf32> to vector<1x128xf32>
    %cst_24 = arith.constant 8.000000e+00 : f32
    %69 = vector.broadcast %cst_24 : f32 to vector<1x128xf32>
    %70 = arith.divf %68, %69 : vector<1x128xf32>
    %71 = vector.broadcast %70 : vector<1x128xf32> to vector<8x128xf32>
    %72 = arith.subf %64, %71 : vector<8x128xf32>
    %73 = arith.mulf %72, %72 : vector<8x128xf32>
    %cst_25 = arith.constant dense<0.000000e+00> : vector<128xf32>
    %74 = vector.multi_reduction <add>, %73, %cst_25 [0] : vector<8x128xf32> to vector<128xf32>
    %75 = vector.shape_cast %74 : vector<128xf32> to vector<1x128xf32>
    %cst_26 = arith.constant 8.000000e+00 : f32
    %76 = vector.broadcast %cst_26 : f32 to vector<1x128xf32>
    %77 = arith.divf %75, %76 : vector<1x128xf32>
    %cst_27 = arith.constant 9.99999974E-6 : f32
    %78 = vector.broadcast %cst_27 : f32 to vector<1x128xf32>
    %79 = arith.addf %77, %78 : vector<1x128xf32>
    %80 = math.rsqrt %79 : vector<1x128xf32>
    %81 = arith.mulf %65, %80 : vector<1x128xf32>
    %82 = vector.broadcast %81 : vector<1x128xf32> to vector<8x128xf32>
    %83 = arith.mulf %72, %82 : vector<8x128xf32>
    %84 = vector.broadcast %66 : vector<1x128xf32> to vector<8x128xf32>
    %85 = arith.addf %83, %84 : vector<8x128xf32>
    %86 = vector.extract_strided_slice %0 {offsets = [8, 0], sizes = [1, 128], strides = [1, 1]} : vector<9x128xf32> to vector<1x128xf32>
    %87 = vector.broadcast %86 : vector<1x128xf32> to vector<8x128xf32>
    %88 = arith.addf %85, %87 : vector<8x128xf32>
    %cst_28 = arith.constant dense<0xFF800000> : vector<8xf32>
    %89 = vector.multi_reduction <maximumf>, %88, %cst_28 [1] : vector<8x128xf32> to vector<8xf32>
    %90 = vector.shape_cast %89 : vector<8xf32> to vector<8x1xf32>
    %91 = vector.broadcast %90 : vector<8x1xf32> to vector<8x128xf32>
    %92 = arith.subf %88, %91 : vector<8x128xf32>
    %93 = math.exp %92 : vector<8x128xf32>
    %cst_29 = arith.constant dense<0.000000e+00> : vector<8xf32>
    %94 = vector.multi_reduction <add>, %93, %cst_29 [1] : vector<8x128xf32> to vector<8xf32>
    %95 = vector.shape_cast %94 : vector<8xf32> to vector<8x1xf32>
    %96 = vector.broadcast %95 : vector<8x1xf32> to vector<8x128xf32>
    %97 = arith.divf %93, %96 : vector<8x128xf32>
    %c0_30 = arith.constant 0 : index
    %c0_31 = arith.constant 0 : index
    %98 = vector.load %arg5[%c0_30, %c0_31] : memref<8x128xf32, #tpu.memory_space<vmem>>, vector<8x128xf32>
    tpu.vector_store %arg5[%c0_30, %c0_31], %97 {strides = array<i32>} : memref<8x128xf32, #tpu.memory_space<vmem>>, vector<8x128xf32>,
    return
  }
}

</mosaic_0001>

<llo_original>
// kernel: clonalp_forward.1
$region0: #{clonalp_forward.1}
  #allocation0 [shape = 'u32[]', space=smem, size = 0x4, offset = 0x4, fixed_abs, tag = 'smem constant byte address 0x4 - core index']
  #allocation1 [shape = 'u32[72,128]{1,0:T(1,128)}', space=vmem, size = 0x9000, scoped, tag = 'internal scratch']
  %s0 = inlined_call_operand.hbm [shape: f32[8,32], index: 0, kind: input, shape index: {}]
  %s1 = inlined_call_operand.hbm [shape: bf16[32,128], index: 1, kind: input, shape index: {}]
  %s2 = inlined_call_operand.hbm [shape: bf16[128,128], index: 2, kind: input, shape index: {}]
  %s3 = inlined_call_operand.hbm [shape: bf16[128,128], index: 3, kind: input, shape index: {}]
  %s4 = inlined_call_operand.hbm [shape: f32[9,128], index: 4, kind: input, shape index: {}]
  %s5 = inlined_call_operand.hbm [shape: f32[8,128], index: 5, kind: output, shape index: {}]
  %s6 = sld [smem:[#allocation0]]
  $region50: #{clonalp_forward.1} parent=0
    _
  %s8 = ssub.s32 1, %s6
  %s9 = scalar_select 0, %s8, %s6
  $region1: #{clonalp_forward.1} parent=0
    #allocation2 [shape = 'u8[4096]{0}', space=vmem, size = 0x1000, scoped, tag = 'input window, operand 0, single buffered']
    #allocation3 [shape = 's32[1]{0}', space=sflag, size = 0x4, scoped, tag = 'scoped memory for clonalp_forward.1']
    #allocation4 [shape = 's32[1]{0}', space=sflag, size = 0x4, scoped, tag = 'scoped memory for clonalp_forward.1']
    #allocation5 [shape = 'u8[8192]{0}', space=vmem, size = 0x2000, scoped, tag = 'input window, operand 1, single buffered']
    #allocation6 [shape = 's32[1]{0}', space=sflag, size = 0x4, scoped, tag = 'scoped memory for clonalp_forward.1']
    #allocation7 [shape = 'u8[32768]{0}', space=vmem, size = 0x8000, scoped, tag = 'input window, operand 2, single buffered']
    #allocation8 [shape = 'u8[32768]{0}', space=vmem, size = 0x8000, scoped, tag = 'input window, operand 3, single buffered']
    #allocation9 [shape = 's32[1]{0}', space=sflag, size = 0x4, scoped, tag = 'scoped memory for clonalp_forward.1']
    #allocation10 [shape = 'u8[8192]{0}', space=vmem, size = 0x2000, scoped, tag = 'input window, operand 4, single buffered']
    #allocation11 [shape = 'u8[4096]{0}', space=vmem, size = 0x1000, scoped, tag = 'output window, operand 0, single buffered']
    %10 = vsyncpa [#allocation3], 0
    %11 = vsyncpa [#allocation6], 0
    %12 = vsyncpa [#allocation9], 0
    %13 = vsyncpa [#allocation4], 0
    // Predicated region
    $region2: #{clonalp_forward.1} parent=1 // pred_check
      _
    $region3: #{clonalp_forward.1} parent=1 // pred_check_branch
      %15 = sbr.rel (0) target = $region5
    $region4: #{clonalp_forward.1} parent=1 // pred_region
      %17 = vsyncadd [#allocation3], 0
      %s19 = sshll.u32 %s0, 4
      %s20 = int_to_ptr.hbm [resolvable:$true] %s19
      %s21 = sshll.u32 [#allocation2], 4
      %s22 = int_to_ptr.vmem [resolvable:$true] %s21
      %24 = dma.hbm_to_vmem [thread:$0]  %s20, 128, %s22, [#allocation3]
    $region5: #{clonalp_forward.1} parent=1 // pred_fallthru
      _
    // Predicated region
    $region6: #{clonalp_forward.1} parent=1 // pred_check
      _
    $region7: #{clonalp_forward.1} parent=1 // pred_check_branch
      %26 = sbr.rel (0) target = $region9
    $region8: #{clonalp_forward.1} parent=1 // pred_region
      %28 = vsyncadd [#allocation6], 0
      %s29 = sshll.u32 %s1, 4
      %s30 = int_to_ptr.hbm [resolvable:$true] %s29
      %s31 = sshll.u32 [#allocation5], 4
      %s32 = int_to_ptr.vmem [resolvable:$true] %s31
      %37 = dma.hbm_to_vmem [thread:$0]  %s30, 256, %s32, [#allocation6], 64, 64, 4
    $region9: #{clonalp_forward.1} parent=1 // pred_fallthru
      _
    // Predicated region
    $region10: #{clonalp_forward.1} parent=1 // pred_check
      _
    $region11: #{clonalp_forward.1} parent=1 // pred_check_branch
      %39 = sbr.rel (0) target = $region13
    $region12: #{clonalp_forward.1} parent=1 // pred_region
      %41 = vsyncadd [#allocation6], 0
      %s42 = sshll.u32 %s2, 4
      %s43 = int_to_ptr.hbm [resolvable:$true] %s42
      %s44 = sshll.u32 [#allocation7], 4
      %s45 = int_to_ptr.vmem [resolvable:$true] %s44
      %50 = dma.hbm_to_vmem [thread:$0]  %s43, 1024, %s45, [#allocation6], 64, 64, 4
    $region13: #{clonalp_forward.1} parent=1 // pred_fallthru
      _
    // Predicated region
    $region14: #{clonalp_forward.1} parent=1 // pred_check
      _
    $region15: #{clonalp_forward.1} parent=1 // pred_check_branch
      %52 = sbr.rel (0) target = $region17
    $region16: #{clonalp_forward.1} parent=1 // pred_region
      %54 = vsyncadd [#allocation9], 0
      %s55 = sshll.u32 %s3, 4
      %s56 = int_to_ptr.hbm [resolvable:$true] %s55
      %s57 = sshll.u32 [#allocation8], 4
      %s58 = int_to_ptr.vmem [resolvable:$true] %s57
      %63 = dma.hbm_to_vmem [thread:$0]  %s56, 1024, %s58, [#allocation9], 64, 64, 4
    $region17: #{clonalp_forward.1} parent=1 // pred_fallthru
      _
    // Predicated region
    $region18: #{clonalp_forward.1} parent=1 // pred_check
      _
    $region19: #{clonalp_forward.1} parent=1 // pred_check_branch
      %65 = sbr.rel (0) target = $region21
    $region20: #{clonalp_forward.1} parent=1 // pred_region
      %67 = vsyncadd [#allocation9], 0
      %s68 = sshll.u32 %s4, 4
      %s69 = int_to_ptr.hbm [resolvable:$true] %s68
      %s70 = sshll.u32 [#allocation10], 4
      %s71 = int_to_ptr.vmem [resolvable:$true] %s70
      %76 = dma.hbm_to_vmem [thread:$0]  %s69, 256, %s71, [#allocation9], 128, 128, 8
    $region21: #{clonalp_forward.1} parent=1 // pred_fallthru
      _
    // Predicated region
    $region22: #{clonalp_forward.1} parent=1 // pred_check
      _
    $region23: #{clonalp_forward.1} parent=1 // pred_check_branch
      %78 = sbr.rel (0) target = $region25
    $region24: #{clonalp_forward.1} parent=1 // pred_region
      %80 = dma.done [#allocation3], 128
    $region25: #{clonalp_forward.1} parent=1 // pred_fallthru
      _
    // Predicated region
    $region26: #{clonalp_forward.1} parent=1 // pred_check
      _
    $region27: #{clonalp_forward.1} parent=1 // pred_check_branch
      %82 = sbr.rel (0) target = $region29
    $region28: #{clonalp_forward.1} parent=1 // pred_region
      %84 = dma.done [#allocation6], 256
    $region29: #{clonalp_forward.1} parent=1 // pred_fallthru
      _
    // Predicated region
    $region30: #{clonalp_forward.1} parent=1 // pred_check
      _
    $region31: #{clonalp_forward.1} parent=1 // pred_check_branch
      %86 = sbr.rel (0) target = $region33
    $region32: #{clonalp_forward.1} parent=1 // pred_region
      %88 = dma.done [#allocation6], 1024
    $region33: #{clonalp_forward.1} parent=1 // pred_fallthru
      _
    // Predicated region
    $region34: #{clonalp_forward.1} parent=1 // pred_check
      _
    $region35: #{clonalp_forward.1} parent=1 // pred_check_branch
      %90 = sbr.rel (0) target = $region37
    $region36: #{clonalp_forward.1} parent=1 // pred_region
      %92 = dma.done [#allocation9], 1024
    $region37: #{clonalp_forward.1} parent=1 // pred_fallthru
      _
    // Predicated region
    $region38: #{clonalp_forward.1} parent=1 // pred_check
      _
    $region39: #{clonalp_forward.1} parent=1 // pred_check_branch
      %94 = sbr.rel (0) target = $region41
    $region40: #{clonalp_forward.1} parent=1 // pred_region
      %96 = dma.done [#allocation9], 256
    $region41: #{clonalp_forward.1} parent=1 // pred_fallthru
      _
    %v98 = vld [vmem:[#allocation10] sm:$0xff]
    %v99 = vld [vmem:[#allocation10 + $0x8] sm:$0x1]
    %v100 = vld [vmem:[#allocation2] sm:$0xff]
    %v101 = vpack.c.bf16 %v100, %v100
    %v102 = vld [vmem:[#allocation5] sm:$0xf]
    %v103 = vld [vmem:[#allocation5 + $0x4] sm:$0xf]
    %v104 = vld [vmem:[#allocation5 + $0x8] sm:$0xf]
    %v105 = vld [vmem:[#allocation5 + $0xc] sm:$0xf]
    %v110 = vunpack.c.l.b16 %v102
    %v111 = vunpack.c.l.b16 %v103
    %v112 = vunpack.c.l.b16 %v104
    %v113 = vunpack.c.l.b16 %v105
    %v114 = vpack.c.b16 %v111, %v110
    %v115 = vpack.c.b16 %v113, %v112
    %vm118 = vcmask 261120
    %v120 = vsel %vm118, %v101, 0
    %122 = vmatpush.bf16.msra.mxu0 0
    %123 = vmatpush.bf16.msra.mxu0 0
    %124 = vmatpush.bf16.msra.mxu0 0
    %125 = vmatpush.bf16.msra.mxu0 0
    %126 = vmatpush.bf16.msra.mxu0 0
    %127 = vmatpush.bf16.msra.mxu0 0
    %128 = vmatpush.bf16.msra.mxu0 %v115
    %129 = vmatpush.bf16.msra.mxu0 %v114
    %130 = vmatmul.bf16.gmra.mxu0 %v120
    %v131 = vpop.f32.mrf.mxu0
    %v132 = vadd.f32 0.0, %v131
    %v133 = vpop.f32.mrf.mxu0
    %134 = vdwg.mxu0
    %v135 = vrot.slane %v132, 4
    %v136 = vadd.f32 %v132, %v135
    %v137 = vrot.slane %v136, 2
    %v138 = vadd.f32 %v136, %v137
    %v139 = vrot.slane %v138, 1
    %v140 = vadd.f32 %v138, %v139
    %v141 = vrcp.pop 8.0
    %v142 = vmul.f32 8.0, %v141
    %v143 = vsub.f32 1.0, %v142
    %v144 = vmul.f32 %v141, %v143
    %v145 = vadd.f32 %v141, %v144
    %vm146 = vweird.f32 %v141
    %v147 = vsel %vm146, %v141, %v145
    %v148 = vmul.f32 %v140, %v147
    %v149 = vsub.f32 %v132, %v148
    %v150 = vmul.f32 %v149, %v149
    %v151 = vrot.slane %v150, 4
    %v152 = vadd.f32 %v150, %v151
    %v153 = vrot.slane %v152, 2
    %v154 = vadd.f32 %v152, %v153
    %v155 = vrot.slane %v154, 1
    %v156 = vadd.f32 %v154, %v155
    %v157 = vmul.f32 %v156, %v147
    %v158 = vadd.f32 %v157, 1e-05
    %v159 = vrsqrt.pop %v158
    %v160 = vmul.f32 %v159, %v158
    %v161 = vmul.f32 %v160, %v159
    %v162 = vmul.f32 0.5, %v161
    %v163 = vsub.f32 1.5, %v162
    %v164 = vmul.f32 %v159, %v163
    %vm165 = vweird.f32 %v158
    %vm166 = vweird.f32 %v159
    %vm167 = vmor %vm165, %vm166
    %v168 = vsel %vm167, %v159, %v164
    %v169 = vmul.f32 %v98, %v168
    %v170 = vperm.slane %v169, 0
    %v171 = vmul.f32 %v149, %v170
    %v172 = vperm.slane %v98, 1
    %v173 = vadd.f32 %v171, %v172
    %vm174 = vcmp.gt.f32.partialorder %v173, 0.0
    %v175 = vperm.slane %v98, 2
    %v176 = vmul.f32 %v175, %v173
    %v177 = vsel %vm174, %v173, %v176
    %v178 = vpack.c.bf16 %v177, %v177
    %v179 = vld [vmem:[#allocation7] sm:$0xf]
    %v180 = vld [vmem:[#allocation7 + $0x4] sm:$0xf]
    %v181 = vld [vmem:[#allocation7 + $0x8] sm:$0xf]
    %v182 = vld [vmem:[#allocation7 + $0xc] sm:$0xf]
    %v183 = vld [vmem:[#allocation7 + $0x10] sm:$0xf]
    %v184 = vld [vmem:[#allocation7 + $0x14] sm:$0xf]
    %v185 = vld [vmem:[#allocation7 + $0x18] sm:$0xf]
    %v186 = vld [vmem:[#allocation7 + $0x1c] sm:$0xf]
    %v187 = vld [vmem:[#allocation7 + $0x20] sm:$0xf]
    %v188 = vld [vmem:[#allocation7 + $0x24] sm:$0xf]
    %v189 = vld [vmem:[#allocation7 + $0x28] sm:$0xf]
    %v190 = vld [vmem:[#allocation7 + $0x2c] sm:$0xf]
    %v191 = vld [vmem:[#allocation7 + $0x30] sm:$0xf]
    %v192 = vld [vmem:[#allocation7 + $0x34] sm:$0xf]
    %v193 = vld [vmem:[#allocation7 + $0x38] sm:$0xf]
    %v194 = vld [vmem:[#allocation7 + $0x3c] sm:$0xf]
    %v211 = vunpack.c.l.b16 %v179
    %v212 = vunpack.c.l.b16 %v180
    %v213 = vunpack.c.l.b16 %v181
    %v214 = vunpack.c.l.b16 %v182
    %v215 = vunpack.c.l.b16 %v183
    %v216 = vunpack.c.l.b16 %v184
    %v217 = vunpack.c.l.b16 %v185
    %v218 = vunpack.c.l.b16 %v186
    %v219 = vunpack.c.l.b16 %v187
    %v220 = vunpack.c.l.b16 %v188
    %v221 = vunpack.c.l.b16 %v189
    %v222 = vunpack.c.l.b16 %v190
    %v223 = vunpack.c.l.b16 %v191
    %v224 = vunpack.c.l.b16 %v192
    %v225 = vunpack.c.l.b16 %v193
    %v226 = vunpack.c.l.b16 %v194
    %v227 = vpack.c.b16 %v212, %v211
    %v228 = vpack.c.b16 %v214, %v213
    %v229 = vpack.c.b16 %v216, %v215
    %v230 = vpack.c.b16 %v218, %v217
    %v231 = vpack.c.b16 %v220, %v219
    %v232 = vpack.c.b16 %v222, %v221
    %v233 = vpack.c.b16 %v224, %v223
    %v234 = vpack.c.b16 %v226, %v225
    %243 = vmatpush.bf16.msra.mxu0 %v234
    %244 = vmatpush.bf16.msra.mxu0 %v233
    %245 = vmatpush.bf16.msra.mxu0 %v232
    %246 = vmatpush.bf16.msra.mxu0 %v231
    %247 = vmatpush.bf16.msra.mxu0 %v230
    %248 = vmatpush.bf16.msra.mxu0 %v229
    %249 = vmatpush.bf16.msra.mxu0 %v228
    %250 = vmatpush.bf16.msra.mxu0 %v227
    %251 = vmatmul.bf16.gmra.mxu0 %v178
    %v252 = vpop.f32.mrf.mxu0
    %v253 = vadd.f32 0.0, %v252
    %v254 = vpop.f32.mrf.mxu0
    %255 = vdwg.mxu0
    %v256 = vrot.slane %v253, 4
    %v257 = vadd.f32 %v253, %v256
    %v258 = vrot.slane %v257, 2
    %v259 = vadd.f32 %v257, %v258
    %v260 = vrot.slane %v259, 1
    %v261 = vadd.f32 %v259, %v260
    %v262 = vmul.f32 %v261, %v147
    %v263 = vsub.f32 %v253, %v262
    %v264 = vmul.f32 %v263, %v263
    %v265 = vrot.slane %v264, 4
    %v266 = vadd.f32 %v264, %v265
    %v267 = vrot.slane %v266, 2
    %v268 = vadd.f32 %v266, %v267
    %v269 = vrot.slane %v268, 1
    %v270 = vadd.f32 %v268, %v269
    %v271 = vmul.f32 %v270, %v147
    %v272 = vadd.f32 %v271, 1e-05
    %v273 = vrsqrt.pop %v272
    %v274 = vmul.f32 %v273, %v272
    %v275 = vmul.f32 %v274, %v273
    %v276 = vmul.f32 0.5, %v275
    %v277 = vsub.f32 1.5, %v276
    %v278 = vmul.f32 %v273, %v277
    %vm279 = vweird.f32 %v272
    %vm280 = vweird.f32 %v273
    %vm281 = vmor %vm279, %vm280
    %v282 = vsel %vm281, %v273, %v278
    %v283 = vmul.f32 %v98, %v282
    %v284 = vperm.slane %v283, 3
    %v285 = vmul.f32 %v263, %v284
    %v286 = vperm.slane %v98, 4
    %v287 = vadd.f32 %v285, %v286
    %vm288 = vcmp.gt.f32.partialorder %v287, 0.0
    %v289 = vperm.slane %v98, 5
    %v290 = vmul.f32 %v289, %v287
    %v291 = vsel %vm288, %v287, %v290
    %v292 = vpack.c.bf16 %v291, %v291
    %v293 = vld [vmem:[#allocation8] sm:$0xf]
    %v294 = vld [vmem:[#allocation8 + $0x4] sm:$0xf]
    %v295 = vld [vmem:[#allocation8 + $0x8] sm:$0xf]
    %v296 = vld [vmem:[#allocation8 + $0xc] sm:$0xf]
    %v297 = vld [vmem:[#allocation8 + $0x10] sm:$0xf]
    %v298 = vld [vmem:[#allocation8 + $0x14] sm:$0xf]
    %v299 = vld [vmem:[#allocation8 + $0x18] sm:$0xf]
    %v300 = vld [vmem:[#allocation8 + $0x1c] sm:$0xf]
    %v301 = vld [vmem:[#allocation8 + $0x20] sm:$0xf]
    %v302 = vld [vmem:[#allocation8 + $0x24] sm:$0xf]
    %v303 = vld [vmem:[#allocation8 + $0x28] sm:$0xf]
    %v304 = vld [vmem:[#allocation8 + $0x2c] sm:$0xf]
    %v305 = vld [vmem:[#allocation8 + $0x30] sm:$0xf]
    %v306 = vld [vmem:[#allocation8 + $0x34] sm:$0xf]
    %v307 = vld [vmem:[#allocation8 + $0x38] sm:$0xf]
    %v308 = vld [vmem:[#allocation8 + $0x3c] sm:$0xf]
    %v325 = vunpack.c.l.b16 %v293
    %v326 = vunpack.c.l.b16 %v294
    %v327 = vunpack.c.l.b16 %v295
    %v328 = vunpack.c.l.b16 %v296
    %v329 = vunpack.c.l.b16 %v297
    %v330 = vunpack.c.l.b16 %v298
    %v331 = vunpack.c.l.b16 %v299
    %v332 = vunpack.c.l.b16 %v300
    %v333 = vunpack.c.l.b16 %v301
    %v334 = vunpack.c.l.b16 %v302
    %v335 = vunpack.c.l.b16 %v303
    %v336 = vunpack.c.l.b16 %v304
    %v337 = vunpack.c.l.b16 %v305
    %v338 = vunpack.c.l.b16 %v306
    %v339 = vunpack.c.l.b16 %v307
    %v340 = vunpack.c.l.b16 %v308
    %v341 = vpack.c.b16 %v326, %v325
    %v342 = vpack.c.b16 %v328, %v327
    %v343 = vpack.c.b16 %v330, %v329
    %v344 = vpack.c.b16 %v332, %v331
    %v345 = vpack.c.b16 %v334, %v333
    %v346 = vpack.c.b16 %v336, %v335
    %v347 = vpack.c.b16 %v338, %v337
    %v348 = vpack.c.b16 %v340, %v339
    %357 = vmatpush.bf16.msra.mxu0 %v348
    %358 = vmatpush.bf16.msra.mxu0 %v347
    %359 = vmatpush.bf16.msra.mxu0 %v346
    %360 = vmatpush.bf16.msra.mxu0 %v345
    %361 = vmatpush.bf16.msra.mxu0 %v344
    %362 = vmatpush.bf16.msra.mxu0 %v343
    %363 = vmatpush.bf16.msra.mxu0 %v342
    %364 = vmatpush.bf16.msra.mxu0 %v341
    %365 = vmatmul.bf16.gmra.mxu0 %v292
    %v366 = vpop.f32.mrf.mxu0
    %v367 = vadd.f32 0.0, %v366
    %v368 = vpop.f32.mrf.mxu0
    %369 = vdwg.mxu0
    %v370 = vrot.slane %v367, 4
    %v371 = vadd.f32 %v367, %v370
    %v372 = vrot.slane %v371, 2
    %v373 = vadd.f32 %v371, %v372
    %v374 = vrot.slane %v373, 1
    %v375 = vadd.f32 %v373, %v374
    %v376 = vmul.f32 %v375, %v147
    %v377 = vsub.f32 %v367, %v376
    %v378 = vmul.f32 %v377, %v377
    %v379 = vrot.slane %v378, 4
    %v380 = vadd.f32 %v378, %v379
    %v381 = vrot.slane %v380, 2
    %v382 = vadd.f32 %v380, %v381
    %v383 = vrot.slane %v382, 1
    %v384 = vadd.f32 %v382, %v383
    %v385 = vmul.f32 %v384, %v147
    %v386 = vadd.f32 %v385, 1e-05
    %v387 = vrsqrt.pop %v386
    %v388 = vmul.f32 %v387, %v386
    %v389 = vmul.f32 %v388, %v387
    %v390 = vmul.f32 0.5, %v389
    %v391 = vsub.f32 1.5, %v390
    %v392 = vmul.f32 %v387, %v391
    %vm393 = vweird.f32 %v386
    %vm394 = vweird.f32 %v387
    %vm395 = vmor %vm393, %vm394
    %v396 = vsel %vm395, %v387, %v392
    %v397 = vmul.f32 %v98, %v396
    %v398 = vperm.slane %v397, 6
    %v399 = vmul.f32 %v377, %v398
    %v400 = vperm.slane %v98, 7
    %v401 = vadd.f32 %v399, %v400
    %v402 = vperm.slane %v99, 0
    %v403 = vadd.f32 %v401, %v402
    %404 = vmax.xlane.f32.xlu0 %v403
    %v405 = vpop.xlane.xlu0 %404
    %v406 = vsub.f32 %v403, %v405
    %v407 = vmul.f32 %v406, 1.442695
    %v408 = vpow.pop %v407
    %409 = vadd.xlane.f32.xlu0 %v408
    %v410 = vpop.xlane.xlu0 %409
    %v411 = vrcp.pop %v410
    %v412 = vmul.f32 %v410, %v411
    %v413 = vsub.f32 1.0, %v412
    %v414 = vmul.f32 %v411, %v413
    %v415 = vadd.f32 %v411, %v414
    %vm416 = vweird.f32 %v410
    %vm417 = vweird.f32 %v411
    %vm418 = vmor %vm416, %vm417
    %v419 = vsel %vm418, %v411, %v415
    %v420 = vand.u32 2147483647, %v410
    %vm421 = vcmp.eq.f32.partialorder %v420, 8.507059e+37
    %v422 = vand.u32 %v410, 2147483648
    %v423 = vor.u32 1.1754944e-38, %v422
    %v424 = vsel %vm421, %v423, %v419
    %v425 = vmul.f32 %v408, %v424
    %426 = vst [vmem:[#allocation11] sm:$0xff] %v425
    // Predicated region
    $region42: #{clonalp_forward.1} parent=1 // pred_check
      _
    $region43: #{clonalp_forward.1} parent=1 // pred_check_branch
      %428 = sbr.rel (0) target = $region45
    $region44: #{clonalp_forward.1} parent=1 // pred_region
      %430 = vsyncadd [#allocation4], 0
      %s432 = sshll.u32 [#allocation11], 4
      %s433 = int_to_ptr.vmem [resolvable:$true] %s432
      %s434 = sshll.u32 %s5, 4
      %s435 = int_to_ptr.hbm [resolvable:$true] %s434
      %437 = dma.vmem_to_hbm [thread:$0]  %s433, 128, %s435, [#allocation4]
    $region45: #{clonalp_forward.1} parent=1 // pred_fallthru
      _
    // Predicated region
    $region46: #{clonalp_forward.1} parent=1 // pred_check
      _
    $region47: #{clonalp_forward.1} parent=1 // pred_check_branch
      %439 = sbr.rel (0) target = $region49
    $region48: #{clonalp_forward.1} parent=1 // pred_region
      %441 = dma.done [#allocation4], 128
    $region49: #{clonalp_forward.1} parent=1 // pred_fallthru
      _
    %442 = vsyncpa [#allocation3], 1
    %443 = vsyncpa [#allocation6], 1
    %444 = vsyncpa [#allocation9], 1
    %445 = vsyncpa [#allocation4], 1

</llo_original>
